<compile_context>
chip_gen: v5e
topology: v5e:2x2
jax: 0.10.0
libtpu: 0.0.40
codegen_flags: <defaults>
</compile_context>

<pallas_src>
import jax
import jax.numpy as jnp
from jax import lax
from jax.experimental import pallas as pl
from jax.experimental.pallas import tpu as pltpu


# ----------------------------- Pallas kernel -------------------------------
def se_kernel(x_ref, w1_ref, b1_ref, w2_ref, b2_ref, o_ref):
    # x_ref: (Bt, C, HW*2) — real/imag interleaved along the lane dimension
    # (even lanes = real, odd lanes = imag).
    x = x_ref[...]
    bt, c, hw2 = x.shape

    # Lane-parity mask, built only over the lane axis and broadcast.
    parity = lax.broadcasted_iota(jnp.int32, (1, 1, hw2), dimension=2) % 2
    is_re = parity == 0

    # Spatial sums of real / imag lanes (mean scale 1/HW is folded into W1).
    s_all = jnp.sum(x, axis=-1)                        # (Bt, C)  sum(re)+sum(im)
    sr = jnp.sum(jnp.where(is_re, x, 0.0), axis=-1)    # (Bt, C)  sum of x_r
    si = s_all - sr                                    # (Bt, C)  sum of x_i

    # Batched 2-layer MLP for both branches (fc_r, fc_i) and both inputs
    # (pooled real, pooled imag) in two MXU matmuls.
    p = jnp.concatenate([sr, si], axis=0)              # (2*Bt, C): [pr; pi]
    h = jnp.dot(p, w1_ref[...], preferred_element_type=jnp.float32) + b1_ref[...]
    h = jnp.maximum(h, 0.0)                            # (2*Bt, 2*hid)
    o = jnp.dot(h, w2_ref[...], preferred_element_type=jnp.float32) + b2_ref[...]
    o = jax.nn.sigmoid(o)                              # (2*Bt, 2*C)

    fr = o[:, :c]            # fc_r applied to [pr; pi]
    fi = o[:, c:]            # fc_i applied to [pr; pi]
    y_r = fr[:bt] - fi[bt:]  # fc_r(pr) - fc_i(pi)   (Bt, C)
    y_i = fr[bt:] + fi[:bt]  # fc_r(pi) + fc_i(pr)   (Bt, C)

    # Select the right gate per lane parity and rescale in-place layout.
    gate = jnp.where(is_re, y_r[:, :, None], y_i[:, :, None])
    o_ref[...] = (x * gate).astype(o_ref.dtype)


# --------------------------- block-size heuristic ----------------------------
def _choose_block_b(B, C, HW2, itemsize, target_block_bytes=2 << 20):
    """Largest divisor of B with block <= target bytes, keeping grid >= 2."""
    per_b = C * HW2 * itemsize
    best = 1
    for bb in range(1, B + 1):
        if B % bb != 0:
            continue
        if bb * per_b > target_block_bytes:
            continue
        if B >= 2 and (B // bb) < 2:
            # Keep at least 2 grid steps so "parallel" can shard across the
            # two TensorCores on v7x.
            continue
        best = bb
    return best


# ------------------------------- wrapper ------------------------------------
def _se_layer_impl(x, params):
    """x: (B, C, H, W, 2) float32. Returns same shape."""
    B, C, H, W, two = x.shape
    assert two == 2
    HW = H * W
    HW2 = HW * 2
    hid = params["w1r"].shape[1]

    block_b = _choose_block_b(B, C, HW2, x.dtype.itemsize)
    assert B % block_b == 0

    # ---- pack weights at trace time (tiny arrays, effectively free) ----
    # Layer 1: [w1r | w1i] with the 1/HW mean scale folded in.
    w1 = jnp.concatenate([params["w1r"], params["w1i"]], axis=1) * (1.0 / HW)  # (C, 2h)
    b1 = jnp.concatenate([params["b1r"], params["b1i"]], axis=1)               # (1, 2h)
    # Layer 2: block-diagonal [[w2r, 0], [0, w2i]].
    zpad = jnp.zeros((hid, C), dtype=params["w2r"].dtype)
    w2 = jnp.concatenate(
        [jnp.concatenate([params["w2r"], zpad], axis=1),
         jnp.concatenate([zpad, params["w2i"]], axis=1)], axis=0)              # (2h, 2C)
    b2 = jnp.concatenate([params["b2r"], params["b2i"]], axis=1)               # (1, 2C)

    # Free, contiguous reshape: re/im stay interleaved on the lane axis.
    x_flat = x.reshape(B, C, HW2)

    xspec = pl.BlockSpec((block_b, C, HW2), lambda b: (b, 0, 0))

    def wspec(shape):
        return pl.BlockSpec(shape, lambda b: (0, 0))

    # VMEM budget: in + out blocks, double-buffered (~4 live copies) + weights.
    block_bytes = block_b * C * HW2 * x.dtype.itemsize
    vmem_limit = int(min(96 * 2**20, max(32 * 2**20, 6 * block_bytes)))

    out = pl.pallas_call(
        se_kernel,
        out_shape=jax.ShapeDtypeStruct((B, C, HW2), x.dtype),
        grid_spec=pltpu.PrefetchScalarGridSpec(
            num_scalar_prefetch=0,
            grid=(B // block_b,),
            in_specs=[xspec,
                      wspec((C, 2 * hid)), wspec((1, 2 * hid)),
                      wspec((2 * hid, 2 * C)), wspec((1, 2 * C))],
            out_specs=xspec),
        input_output_aliases={0: 0},   # pure in-place rescale of x_flat
        compiler_params=pltpu.CompilerParams(
            dimension_semantics=("parallel",),
            vmem_limit_bytes=vmem_limit),
    )(x_flat, w1, b1, w2, b2)

    return out.reshape(B, C, H, W, 2)


se_layer_pallas = jax.jit(_se_layer_impl)


# ----------------------- pure-JAX reference (for check) ---------------------
def se_layer_ref(x, params):
    xr = x[..., 0].mean(axis=(2, 3))   # (B, C)
    xi = x[..., 1].mean(axis=(2, 3))   # (B, C)

    def fc(v, w1, b1, w2, b2):
        h = jnp.maximum(v @ w1 + b1, 0.0)
        return jax.nn.sigmoid(h @ w2 + b2)

    fr = lambda v: fc(v, params["w1r"], params["b1r"], params["w2r"], params["b2r"])
    fi = lambda v: fc(v, params["w1i"], params["b1i"], params["w2i"], params["b2i"])

    y_r = (fr(xr) - fi(xi))[:, :, None, None, None]
    y_i = (fr(xi) + fi(xr))[:, :, None, None, None]
    y = jnp.concatenate([y_r, y_i], axis=4)   # (B, C, 1, 1, 2)
    return x * y


# ----------------------------- parameter init -------------------------------
def init_params(key, channel, reduction=16):
    hid = channel // reduction
    keys = jax.random.split(key, 8)

    def linear(kw, kb, fan_in, fan_out):
        bound = 1.0 / jnp.sqrt(fan_in)
        w = jax.random.uniform(kw, (fan_in, fan_out), jnp.float32, -bound, bound)
        b = jax.random.uniform(kb, (1, fan_out), jnp.float32, -bound, bound)
        return w, b

    w1r, b1r = linear(keys[0], keys[1], channel, hid)
    w2r, b2r = linear(keys[2], keys[3], hid, channel)
    w1i, b1i = linear(keys[4], keys[5], channel, hid)
    w2i, b2i = linear(keys[6], keys[7], hid, channel)
    return dict(w1r=w1r, b1r=b1r, w2r=w2r, b2r=b2r,
                w1i=w1i, b1i=b1i, w2i=w2i, b2i=b2i)


# --------------------------------- main --------------------------------------
if __name__ == "__main__":
    B, C, H, W = 2, 32, 8, 8          # channel=32, reduction=16 -> hidden=2
    key = jax.random.PRNGKey(0)
    k_x, k_p = jax.random.split(key)

    x = jax.random.normal(k_x, (B, C, H, W, 2), dtype=jnp.float32)
    params = init_params(k_p, C, reduction=16)

    ref = se_layer_ref(x, params)

    out = se_layer_pallas(x, params)
    out = jax.block_until_ready(out)

    assert out.shape == x.shape
    assert jnp.allclose(out, ref, atol=1e-5, rtol=1e-5), "mismatch vs reference"

    print("KERNEL_OK")
</pallas_src>

<mosaic_0001>
module attributes {stable_mosaic.version = 11 : i64} {
  func.func @se_kernel(%arg0: i32, %arg1: memref<1x32x128xf32, #tpu.memory_space<vmem>>, %arg2: memref<32x4xf32, #tpu.memory_space<vmem>>, %arg3: memref<1x4xf32, #tpu.memory_space<vmem>>, %arg4: memref<4x64xf32, #tpu.memory_space<vmem>>, %arg5: memref<1x64xf32, #tpu.memory_space<vmem>>, %arg6: memref<1x32x128xf32, #tpu.memory_space<vmem>>) attributes {dimension_semantics = [#tpu.dimension_semantics<parallel>], iteration_bounds = array<i64: 2>, scalar_prefetch = 0 : i64, scratch_operands = 0 : i64, tpu.core_type = #tpu.core_type<tc>, window_params = [{transform_indices = @transform_0, window_bounds = array<i64: 1, 32, 128>}, {pipeline_mode = #tpu.pipeline_mode<synchronous>, transform_indices = @transform_1, window_bounds = array<i64: 32, 4>}, {pipeline_mode = #tpu.pipeline_mode<synchronous>, transform_indices = @transform_2, window_bounds = array<i64: 1, 4>}, {pipeline_mode = #tpu.pipeline_mode<synchronous>, transform_indices = @transform_3, window_bounds = array<i64: 4, 64>}, {pipeline_mode = #tpu.pipeline_mode<synchronous>, transform_indices = @transform_4, window_bounds = array<i64: 1, 64>}, {transform_indices = @transform_5, window_bounds = array<i64: 1, 32, 128>}]} {
    %c0 = arith.constant 0 : index
    %c0_0 = arith.constant 0 : index
    %c0_1 = arith.constant 0 : index
    %0 = vector.load %arg1[%c0, %c0_0, %c0_1] : memref<1x32x128xf32, #tpu.memory_space<vmem>>, vector<1x32x128xf32>
    %1 = tpu.iota {dimensions = array<i32: 2>} : vector<1x1x128xi32>
    %c2_i32 = arith.constant 2 : i32
    %c0_i32 = arith.constant 0 : i32
    %2 = arith.cmpi eq, %c2_i32, %c0_i32 : i32
    %c1_i32 = arith.constant 1 : i32
    %3 = arith.select %2, %c1_i32, %c2_i32 : i32
    %4 = vector.broadcast %3 : i32 to vector<1x1x128xi32>
    %5 = arith.remsi %1, %4 : vector<1x1x128xi32>
    %c0_i32_2 = arith.constant 0 : i32
    %6 = vector.broadcast %c0_i32_2 : i32 to vector<1x1x128xi32>
    %7 = arith.cmpi ne, %5, %6 : vector<1x1x128xi32>
    %c0_i32_3 = arith.constant 0 : i32
    %8 = vector.broadcast %c0_i32_3 : i32 to vector<1x1x128xi32>
    %9 = arith.cmpi slt, %5, %8 : vector<1x1x128xi32>
    %c0_i32_4 = arith.constant 0 : i32
    %10 = arith.cmpi slt, %3, %c0_i32_4 : i32
    %11 = vector.broadcast %10 : i1 to vector<1x1x128xi1>
    %12 = vector.broadcast %11 : vector<1x1x128xi1> to vector<1x1x128xi1>
    %13 = arith.xori %9, %12 : vector<1x1x128xi1>
    %14 = arith.andi %13, %7 : vector<1x1x128xi1>
    %15 = vector.broadcast %3 : i32 to vector<1x1x128xi32>
    %16 = arith.addi %5, %15 : vector<1x1x128xi32>
    %17 = arith.select %14, %16, %5 : vector<1x1x128xi1>, vector<1x1x128xi32>
    %c0_i32_5 = arith.constant 0 : i32
    %18 = vector.broadcast %c0_i32_5 : i32 to vector<1x1x128xi32>
    %19 = arith.cmpi eq, %17, %18 : vector<1x1x128xi32>
    %cst = arith.constant dense<0.000000e+00> : vector<1x32xf32>
    %20 = vector.multi_reduction <add>, %0, %cst [2] : vector<1x32x128xf32> to vector<1x32xf32>
    %cst_6 = arith.constant 0.000000e+00 : f32
    %21 = vector.shape_cast %19 : vector<1x1x128xi1> to vector<1x1x128xi1>
    %22 = vector.broadcast %21 : vector<1x1x128xi1> to vector<1x32x128xi1>
    %23 = vector.broadcast %cst_6 : f32 to vector<1x32x128xf32>
    %24 = arith.select %22, %0, %23 : vector<1x32x128xi1>, vector<1x32x128xf32>
    %cst_7 = arith.constant dense<0.000000e+00> : vector<1x32xf32>
    %25 = vector.multi_reduction <add>, %24, %cst_7 [2] : vector<1x32x128xf32> to vector<1x32xf32>
    %26 = arith.subf %20, %25 : vector<1x32xf32>
    %27 = tpu.concatenate %25, %26 in 0 : vector<1x32xf32>, vector<1x32xf32> -> vector<2x32xf32>
    %c0_8 = arith.constant 0 : index
    %c0_9 = arith.constant 0 : index
    %28 = vector.load %arg2[%c0_8, %c0_9] : memref<32x4xf32, #tpu.memory_space<vmem>>, vector<32x4xf32>
    %cst_10 = arith.constant dense<0.000000e+00> : vector<2x4xf32>
    %29 = tpu.matmul %27, %28, %cst_10 {dimension_numbers = #tpu.dot_dimension_numbers<[1], [0], [0], [1], [0, 0, 1, 1], [], []>} : vector<2x32xf32>, vector<32x4xf32>, vector<2x4xf32> -> vector<2x4xf32>
    %c0_11 = arith.constant 0 : index
    %c0_12 = arith.constant 0 : index
    %30 = vector.load %arg3[%c0_11, %c0_12] : memref<1x4xf32, #tpu.memory_space<vmem>>, vector<1x4xf32>
    %31 = vector.broadcast %30 : vector<1x4xf32> to vector<2x4xf32>
    %32 = arith.addf %29, %31 : vector<2x4xf32>
    %cst_13 = arith.constant 0.000000e+00 : f32
    %33 = vector.broadcast %cst_13 : f32 to vector<2x4xf32>
    %34 = arith.maximumf %32, %33 : vector<2x4xf32>
    %c0_14 = arith.constant 0 : index
    %c0_15 = arith.constant 0 : index
    %35 = vector.load %arg4[%c0_14, %c0_15] : memref<4x64xf32, #tpu.memory_space<vmem>>, vector<4x64xf32>
    %cst_16 = arith.constant dense<0.000000e+00> : vector<2x64xf32>
    %36 = tpu.matmul %34, %35, %cst_16 {dimension_numbers = #tpu.dot_dimension_numbers<[1], [0], [0], [1], [0, 0, 1, 1], [], []>} : vector<2x4xf32>, vector<4x64xf32>, vector<2x64xf32> -> vector<2x64xf32>
    %c0_17 = arith.constant 0 : index
    %c0_18 = arith.constant 0 : index
    %37 = vector.load %arg5[%c0_17, %c0_18] : memref<1x64xf32, #tpu.memory_space<vmem>>, vector<1x64xf32>
    %38 = vector.broadcast %37 : vector<1x64xf32> to vector<2x64xf32>
    %39 = arith.addf %36, %38 : vector<2x64xf32>
    %40 = arith.negf %39 : vector<2x64xf32>
    %41 = math.exp %40 : vector<2x64xf32>
    %cst_19 = arith.constant 1.000000e+00 : f32
    %42 = vector.broadcast %cst_19 : f32 to vector<2x64xf32>
    %43 = arith.addf %42, %41 : vector<2x64xf32>
    %44 = arith.divf %42, %43 : vector<2x64xf32>
    %45 = vector.extract_strided_slice %44 {offsets = [0, 0], sizes = [2, 32], strides = [1, 1]} : vector<2x64xf32> to vector<2x32xf32>
    %46 = vector.extract_strided_slice %44 {offsets = [0, 32], sizes = [2, 32], strides = [1, 1]} : vector<2x64xf32> to vector<2x32xf32>
    %47 = vector.extract_strided_slice %45 {offsets = [0, 0], sizes = [1, 32], strides = [1, 1]} : vector<2x32xf32> to vector<1x32xf32>
    %48 = vector.extract_strided_slice %46 {offsets = [1, 0], sizes = [1, 32], strides = [1, 1]} : vector<2x32xf32> to vector<1x32xf32>
    %49 = arith.subf %47, %48 : vector<1x32xf32>
    %50 = vector.extract_strided_slice %45 {offsets = [1, 0], sizes = [1, 32], strides = [1, 1]} : vector<2x32xf32> to vector<1x32xf32>
    %51 = vector.extract_strided_slice %46 {offsets = [0, 0], sizes = [1, 32], strides = [1, 1]} : vector<2x32xf32> to vector<1x32xf32>
    %52 = arith.addf %50, %51 : vector<1x32xf32>
    %53 = vector.shape_cast %49 : vector<1x32xf32> to vector<1x32x1xf32>
    %54 = vector.shape_cast %52 : vector<1x32xf32> to vector<1x32x1xf32>
    %55 = vector.shape_cast %19 : vector<1x1x128xi1> to vector<1x1x128xi1>
    %56 = vector.broadcast %55 : vector<1x1x128xi1> to vector<1x32x128xi1>
    %57 = vector.shape_cast %53 : vector<1x32x1xf32> to vector<1x32x1xf32>
    %58 = vector.broadcast %57 : vector<1x32x1xf32> to vector<1x32x128xf32>
    %59 = vector.shape_cast %54 : vector<1x32x1xf32> to vector<1x32x1xf32>
    %60 = vector.broadcast %59 : vector<1x32x1xf32> to vector<1x32x128xf32>
    %61 = arith.select %56, %58, %60 : vector<1x32x128xi1>, vector<1x32x128xf32>
    %62 = arith.mulf %0, %61 : vector<1x32x128xf32>
    %c0_20 = arith.constant 0 : index
    %c0_21 = arith.constant 0 : index
    %c0_22 = arith.constant 0 : index
    %63 = vector.load %arg6[%c0_20, %c0_21, %c0_22] : memref<1x32x128xf32, #tpu.memory_space<vmem>>, vector<1x32x128xf32>
    tpu.vector_store %arg6[%c0_20, %c0_21, %c0_22], %62 {strides = array<i32>} : memref<1x32x128xf32, #tpu.memory_space<vmem>>, vector<1x32x128xf32>,
    return
  }
  func.func @transform_0(%arg0: i32) -> (i32, i32, i32) {
    %c0_i32 = arith.constant 0 : i32
    %c0_i32_0 = arith.constant 0 : i32
    %c0_i32_1 = arith.constant 0 : i32
    return %arg0, %c0_i32, %c0_i32_0 : i32, i32, i32
  }
  func.func @transform_1(%arg0: i32) -> (i32, i32) {
    %c0_i32 = arith.constant 0 : i32
    %c0_i32_0 = arith.constant 0 : i32
    %c0_i32_1 = arith.constant 0 : i32
    return %c0_i32, %c0_i32_0 : i32, i32
  }
  func.func @transform_2(%arg0: i32) -> (i32, i32) {
    %c0_i32 = arith.constant 0 : i32
    %c0_i32_0 = arith.constant 0 : i32
    %c0_i32_1 = arith.constant 0 : i32
    return %c0_i32, %c0_i32_0 : i32, i32
  }
  func.func @transform_3(%arg0: i32) -> (i32, i32) {
    %c0_i32 = arith.constant 0 : i32
    %c0_i32_0 = arith.constant 0 : i32
    %c0_i32_1 = arith.constant 0 : i32
    return %c0_i32, %c0_i32_0 : i32, i32
  }
  func.func @transform_4(%arg0: i32) -> (i32, i32) {
    %c0_i32 = arith.constant 0 : i32
    %c0_i32_0 = arith.constant 0 : i32
    %c0_i32_1 = arith.constant 0 : i32
    return %c0_i32, %c0_i32_0 : i32, i32
  }
  func.func @transform_5(%arg0: i32) -> (i32, i32, i32) {
    %c0_i32 = arith.constant 0 : i32
    %c0_i32_0 = arith.constant 0 : i32
    %c0_i32_1 = arith.constant 0 : i32
    return %arg0, %c0_i32, %c0_i32_0 : i32, i32, i32
  }
}

</mosaic_0001>

<llo_original>
// kernel: _se_layer_impl.1
$region0: #{_se_layer_impl.1}
  #allocation0 [shape = 'u32[]', space=smem, size = 0x4, offset = 0x4, fixed_abs, tag = 'smem constant byte address 0x4 - core index']
  #allocation1 [shape = 'u32[72,128]{1,0:T(1,128)}', space=vmem, size = 0x9000, scoped, tag = 'internal scratch']
  %s0 = inlined_call_operand.vmem [shape: f32[2,32,128], index: 0, kind: input, shape index: {}, may-alias: {0,5}]
  %s1 = inlined_call_operand.vmem [shape: f32[32,4], index: 1, kind: input, shape index: {}]
  %s2 = inlined_call_operand.vmem [shape: f32[1,4], index: 2, kind: input, shape index: {}]
  %s3 = inlined_call_operand.vmem [shape: f32[4,64], index: 3, kind: input, shape index: {}]
  %s4 = inlined_call_operand.vmem [shape: f32[1,64], index: 4, kind: input, shape index: {}]
  %s5 = inlined_call_operand.vmem [shape: f32[2,32,128], index: 5, kind: output, shape index: {}, may-alias: {0,5}]
  %s6 = sld [smem:[#allocation0]]
  $region53: #{_se_layer_impl.1} parent=0
    _
  %s8 = ssub.s32 1, %s6
  %s9 = scalar_select 0, %s8, %s6
  loop: start=0, step=1, limit=4
  $region2: #{_se_layer_impl.1} parent=0 // loop_pre_header
    _
  $region3: #{_se_layer_impl.1} parent=0 // loop_header
    %s11 = sphi 0, %s15
    %p12 = scmp.ge.s32.totalorder %s11, 4
    %s21 = sphi 0, %s23
    %s24 = sphi 0, %s21
    %s25 = sphi 0, %s24
    %s41 = sphi 0, %s25
    %s45 = sphi 0, %s45
    %s47 = sphi 0, %s45
    %s48 = sphi 0, %s47
    %s62 = sphi 0, %s48
    %s66 = sphi 0, %s66
    %s68 = sphi 0, %s66
    %s69 = sphi 0, %s68
    %s83 = sphi 0, %s69
    %s87 = sphi 0, %s87
    %s89 = sphi 0, %s87
    %s90 = sphi 0, %s89
    %s104 = sphi 0, %s90
    %s108 = sphi 0, %s108
    %s110 = sphi 0, %s108
    %s111 = sphi 0, %s110
    %s125 = sphi 0, %s111
    %s131 = sphi 0, %s133
    %s134 = sphi 0, %s131
    %s135 = sphi 0, %s134
    %s151 = sphi 0, %s135
  $region4: #{_se_layer_impl.1} parent=0 // loop_header_branch
    %14 = sbr.rel (%p12) target = $region8
  $region5: #{_se_layer_impl.1} parent=0 // loop_body
    %s16 = ssub.s32 %s11, 1
    %s17 = ssub.s32 %s11, 2
    %s18 = sadd.s32 %s11, 1
    %s19 = ssub.s32 %s11, %s18
    %p20 = scmp.eq.s32.totalorder %s19, 0
    %s22 = sadd.s32 %s21, 1
    %s23 = scalar_select %p20, %s21, %s22
    %p26 = pneg %p20
    %p27 = scmp.eq.s32.totalorder %s11, 1
    %p28 = por %p26, %p27
    %p29 = scmp.ne.s32.totalorder %s21, %s24
    %p30 = scmp.eq.s32.totalorder %s11, 0
    %p31 = por %p29, %p30
    %p32 = scmp.ne.s32.totalorder %s21, %s24
    %p33 = scmp.eq.s32.totalorder %s16, 1
    %p34 = por %p32, %p33
    %p35 = scmp.ne.s32.totalorder %s24, %s25
    %p36 = scmp.eq.s32.totalorder %s16, 0
    %p37 = por %p35, %p36
    %p38 = scmp.ne.s32.totalorder %s24, %s25
    %p39 = scmp.eq.s32.totalorder %s17, 1
    %p40 = por %p38, %p39
    %p42 = scmp.ne.s32.totalorder %s25, %s41
    %p43 = scmp.eq.s32.totalorder %s17, 0
    %p44 = por %p42, %p43
    %s46 = sadd.s32 %s45, 1
    %p49 = scmp.eq.s32.totalorder %s11, 1
    %p50 = scmp.ne.s32.totalorder %s45, %s47
    %p51 = scmp.eq.s32.totalorder %s11, 0
    %p52 = por %p50, %p51
    %p53 = scmp.ne.s32.totalorder %s45, %s47
    %p54 = scmp.eq.s32.totalorder %s16, 1
    %p55 = por %p53, %p54
    %p56 = scmp.ne.s32.totalorder %s47, %s48
    %p57 = scmp.eq.s32.totalorder %s16, 0
    %p58 = por %p56, %p57
    %p59 = scmp.ne.s32.totalorder %s47, %s48
    %p60 = scmp.eq.s32.totalorder %s17, 1
    %p61 = por %p59, %p60
    %p63 = scmp.ne.s32.totalorder %s48, %s62
    %p64 = scmp.eq.s32.totalorder %s17, 0
    %p65 = por %p63, %p64
    %s67 = sadd.s32 %s66, 1
    %p70 = scmp.eq.s32.totalorder %s11, 1
    %p71 = scmp.ne.s32.totalorder %s66, %s68
    %p72 = scmp.eq.s32.totalorder %s11, 0
    %p73 = por %p71, %p72
    %p74 = scmp.ne.s32.totalorder %s66, %s68
    %p75 = scmp.eq.s32.totalorder %s16, 1
    %p76 = por %p74, %p75
    %p77 = scmp.ne.s32.totalorder %s68, %s69
    %p78 = scmp.eq.s32.totalorder %s16, 0
    %p79 = por %p77, %p78
    %p80 = scmp.ne.s32.totalorder %s68, %s69
    %p81 = scmp.eq.s32.totalorder %s17, 1
    %p82 = por %p80, %p81
    %p84 = scmp.ne.s32.totalorder %s69, %s83
    %p85 = scmp.eq.s32.totalorder %s17, 0
    %p86 = por %p84, %p85
    %s88 = sadd.s32 %s87, 1
    %p91 = scmp.eq.s32.totalorder %s11, 1
    %p92 = scmp.ne.s32.totalorder %s87, %s89
    %p93 = scmp.eq.s32.totalorder %s11, 0
    %p94 = por %p92, %p93
    %p95 = scmp.ne.s32.totalorder %s87, %s89
    %p96 = scmp.eq.s32.totalorder %s16, 1
    %p97 = por %p95, %p96
    %p98 = scmp.ne.s32.totalorder %s89, %s90
    %p99 = scmp.eq.s32.totalorder %s16, 0
    %p100 = por %p98, %p99
    %p101 = scmp.ne.s32.totalorder %s89, %s90
    %p102 = scmp.eq.s32.totalorder %s17, 1
    %p103 = por %p101, %p102
    %p105 = scmp.ne.s32.totalorder %s90, %s104
    %p106 = scmp.eq.s32.totalorder %s17, 0
    %p107 = por %p105, %p106
    %s109 = sadd.s32 %s108, 1
    %p112 = scmp.eq.s32.totalorder %s11, 1
    %p113 = scmp.ne.s32.totalorder %s108, %s110
    %p114 = scmp.eq.s32.totalorder %s11, 0
    %p115 = por %p113, %p114
    %p116 = scmp.ne.s32.totalorder %s108, %s110
    %p117 = scmp.eq.s32.totalorder %s16, 1
    %p118 = por %p116, %p117
    %p119 = scmp.ne.s32.totalorder %s110, %s111
    %p120 = scmp.eq.s32.totalorder %s16, 0
    %p121 = por %p119, %p120
    %p122 = scmp.ne.s32.totalorder %s110, %s111
    %p123 = scmp.eq.s32.totalorder %s17, 1
    %p124 = por %p122, %p123
    %p126 = scmp.ne.s32.totalorder %s111, %s125
    %p127 = scmp.eq.s32.totalorder %s17, 0
    %p128 = por %p126, %p127
    %s129 = ssub.s32 %s11, %s18
    %p130 = scmp.eq.s32.totalorder %s129, 0
    %s132 = sadd.s32 %s131, 1
    %s133 = scalar_select %p130, %s131, %s132
    %p136 = pneg %p130
    %p137 = scmp.eq.s32.totalorder %s11, 1
    %p138 = por %p136, %p137
    %p139 = scmp.ne.s32.totalorder %s131, %s134
    %p140 = scmp.eq.s32.totalorder %s11, 0
    %p141 = por %p139, %p140
    %p142 = scmp.ne.s32.totalorder %s131, %s134
    %p143 = scmp.eq.s32.totalorder %s16, 1
    %p144 = por %p142, %p143
    %p145 = scmp.ne.s32.totalorder %s134, %s135
    %p146 = scmp.eq.s32.totalorder %s16, 0
    %p147 = por %p145, %p146
    %p148 = scmp.ne.s32.totalorder %s134, %s135
    %p149 = scmp.eq.s32.totalorder %s17, 1
    %p150 = por %p148, %p149
    %p152 = scmp.ne.s32.totalorder %s135, %s151
    %p153 = scmp.eq.s32.totalorder %s17, 0
    %p154 = por %p152, %p153
    %p155 = scmp.le.s32.totalorder 1, %s11
    %p156 = scmp.lt.s32.totalorder %s11, 3
    %p157 = pnand %p155, %p156
    %p158 = pneg %p157
    // Predicated region
    $region9: #{_se_layer_impl.1} parent=5 // pred_check
      _
    $region10: #{_se_layer_impl.1} parent=5 // pred_check_branch
      %160 = sbr.rel (%p157) target = $region12
    $region11: #{_se_layer_impl.1} parent=5 // pred_region
      %s161 = ssub.s32 %s11, 1
      // Predicated region
      $region13: #{_se_layer_impl.1} parent=11 // pred_check
        %p162 = pneg %p58
      $region14: #{_se_layer_impl.1} parent=11 // pred_check_branch
        %164 = sbr.rel (%p162) target = $region16
      $region15: #{_se_layer_impl.1} parent=11 // pred_region
        _
      $region16: #{_se_layer_impl.1} parent=11 // pred_fallthru
        _
      // Predicated region
      $region17: #{_se_layer_impl.1} parent=11 // pred_check
        %p165 = pneg %p79
      $region18: #{_se_layer_impl.1} parent=11 // pred_check_branch
        %167 = sbr.rel (%p165) target = $region20
      $region19: #{_se_layer_impl.1} parent=11 // pred_region
        _
      $region20: #{_se_layer_impl.1} parent=11 // pred_fallthru
        _
      // Predicated region
      $region21: #{_se_layer_impl.1} parent=11 // pred_check
        %p168 = pneg %p100
      $region22: #{_se_layer_impl.1} parent=11 // pred_check_branch
        %170 = sbr.rel (%p168) target = $region24
      $region23: #{_se_layer_impl.1} parent=11 // pred_region
        _
      $region24: #{_se_layer_impl.1} parent=11 // pred_fallthru
        _
      // Predicated region
      $region25: #{_se_layer_impl.1} parent=11 // pred_check
        %p171 = pneg %p121
      $region26: #{_se_layer_impl.1} parent=11 // pred_check_branch
        %173 = sbr.rel (%p171) target = $region28
      $region27: #{_se_layer_impl.1} parent=11 // pred_region
        _
      $region28: #{_se_layer_impl.1} parent=11 // pred_fallthru
        _
    $region12: #{_se_layer_impl.1} parent=5 // pred_fallthru
      _
    %p174 = scmp.lt.s32.totalorder %s11, 2
    // Predicated region
    $region29: #{_se_layer_impl.1} parent=5 // pred_check
      %p175 = pneg %p174
    $region30: #{_se_layer_impl.1} parent=5 // pred_check_branch
      %177 = sbr.rel (%p175) target = $region32
    $region31: #{_se_layer_impl.1} parent=5 // pred_region
      // Predicated region
      $region33: #{_se_layer_impl.1} parent=31 // pred_check
        %p178 = pneg %p31
      $region34: #{_se_layer_impl.1} parent=31 // pred_check_branch
        %180 = sbr.rel (%p178) target = $region36
      $region35: #{_se_layer_impl.1} parent=31 // pred_region
        %p181 = scmp.lt.s32.totalorder %s11, 1
        %s182 = scalar_select %p181, %s11, 1
        %s183 = smul.addr %s182, 4
        %s184 = smul.addr %s183, 8
        %s185 = scalar_lea.vmem %s0, %s184
      $region36: #{_se_layer_impl.1} parent=31 // pred_fallthru
        _
    $region32: #{_se_layer_impl.1} parent=5 // pred_fallthru
      _
    %p186 = scmp.le.s32.totalorder 1, %s11
    %p187 = scmp.lt.s32.totalorder %s11, 3
    %p188 = pnand %p186, %p187
    %p189 = pneg %p188
    // Predicated region
    $region37: #{_se_layer_impl.1} parent=5 // pred_check
      _
    $region38: #{_se_layer_impl.1} parent=5 // pred_check_branch
      %191 = sbr.rel (%p188) target = $region40
    $region39: #{_se_layer_impl.1} parent=5 // pred_region
      %s192 = ssub.s32 %s11, 1
      %p193 = scmp.lt.s32.totalorder %s16, 1
      %s194 = scalar_select %p193, %s16, 1
      %s195 = smul.addr %s194, 4
      %s196 = smul.addr %s195, 8
      %s197 = scalar_lea.vmem %s0, %s196
      %p198 = pneg %p37
      %p199 = pneg %p34
      %p200 = pneg %p58
      %p201 = pneg %p55
      %p202 = pneg %p79
      %p203 = pneg %p76
      %p204 = pneg %p100
      %p205 = pneg %p97
      %p206 = pneg %p121
      %p207 = pneg %p118
      %p208 = pneg %p147
      %p209 = pneg %p144
      %p210 = scmp.lt.s32.totalorder %s16, 1
      %s211 = scalar_select %p210, %s16, 1
      %s212 = smul.addr %s211, 4
      %s213 = smul.addr %s212, 8
      %s214 = scalar_lea.vmem %s5, %s213
      %p215 = scmp.lt.s32.totalorder %s16, 1
      %s216 = scalar_select %p215, %s16, 1
      %s217 = smul.addr %s216, 4
      %s218 = smul.addr %s217, 8
      %s219 = scalar_lea.vmem %s0, %s218
      %p220 = scmp.lt.s32.totalorder %s16, 1
      %s221 = scalar_select %p220, %s16, 1
      %s222 = smul.addr %s221, 4
      %s223 = smul.addr %s222, 8
      %s224 = scalar_lea.vmem %s5, %s223
      %v225 = vld [vmem:[%s219] sm:$0xff]
      %v226 = vld [vmem:[%s219 + $0x8] sm:$0xff]
      %v227 = vld [vmem:[%s219 + $0x10] sm:$0xff]
      %v228 = vld [vmem:[%s219 + $0x18] sm:$0xff]
      %v229 = vlaneseq
      %v230 = vand.u32 %v229, 127
      %vm231 = vcmp.lt.s32.totalorder %v230, 0
      %v232 = vsub.s32 0, %v230
      %v233 = vsel %vm231, %v232, %v230
      %v234 = vshrl.u32 %v233, 1
      %v235 = vand.u32 %v233, 1
      %v236 = vsub.s32 0, %v235
      %v237 = vsel %vm231, %v236, %v235
      %vm238 = vcmp.ne.s32.totalorder %v237, 0
      %vm239 = vcmp.lt.s32.totalorder %v237, 0
      %vm240 = vmand %vm239, %vm238
      %v241 = vadd.s32 %v237, 2
      %v242 = vsel %vm240, %v241, %v237
      %vm243 = vcmp.eq.s32.totalorder %v242, 0
      %244 = vadd.xlane.f32.xlu0 %v225
      %v245 = vpop.xlane.xlu0 %244
      %246 = vadd.xlane.f32.xlu0 %v226
      %v247 = vpop.xlane.xlu0 %246
      %248 = vadd.xlane.f32.xlu0 %v227
      %v249 = vpop.xlane.xlu0 %248
      %250 = vadd.xlane.f32.xlu0 %v228
      %v251 = vpop.xlane.xlu0 %250
      %v252 = vsel %vm243, 1, 0
      %vm253 = vcmp.eq.s32.totalorder %v252, 1
      %v254 = vsel %vm253, %v225, 0.0
      %v255 = vsel %vm253, %v226, 0.0
      %v256 = vsel %vm253, %v227, 0.0
      %v257 = vsel %vm253, %v228, 0.0
      %258 = vadd.xlane.f32.xlu0 %v254
      %v259 = vpop.xlane.xlu0 %258
      %260 = vadd.xlane.f32.xlu0 %v255
      %v261 = vpop.xlane.xlu0 %260
      %262 = vadd.xlane.f32.xlu0 %v256
      %v263 = vpop.xlane.xlu0 %262
      %264 = vadd.xlane.f32.xlu0 %v257
      %v265 = vpop.xlane.xlu0 %264
      %v266 = vsub.f32 %v245, %v259
      %v267 = vsub.f32 %v247, %v261
      %v268 = vsub.f32 %v249, %v263
      %v269 = vsub.f32 %v251, %v265
      %v274 = vperm.slane %v259, %v230
      %v275 = vadd.s32 %v230, 4294967288
      %v276 = vperm.slane %v261, %v275
      %vm277 = vcmask 130112
      %v278 = vsel %vm277, %v276, %v274
      %v279 = vadd.s32 %v230, 4294967280
      %v280 = vperm.slane %v263, %v279
      %vm281 = vcmask 195712
      %v282 = vsel %vm281, %v280, %v278
      %v283 = vadd.s32 %v230, 4294967272
      %v284 = vperm.slane %v265, %v283
      %vm285 = vcmask 261312
      %v286 = vsel %vm285, %v284, %v282
      %v292 = vperm.slane %v266, %v230
      %v293 = vperm.slane %v267, %v275
      %v294 = vsel %vm277, %v293, %v292
      %v295 = vperm.slane %v268, %v279
      %v296 = vsel %vm281, %v295, %v294
      %v297 = vperm.slane %v269, %v283
      %v298 = vsel %vm285, %v297, %v296
      %vm300 = vcmask 1040384
      %v301 = vsel %vm300, %v286, %v298
      %v302 = vld [vmem:[%s1] sm:$0xff]
      %v303 = vld [vmem:[%s1 + $0x8] sm:$0xff]
      %v304 = vld [vmem:[%s1 + $0x10] sm:$0xff]
      %v305 = vld [vmem:[%s1 + $0x18] sm:$0xff]
      %v306 = vld [vmem:[%s2] sm:$0x1]
      %v308 = vperm.slane %v306, 0
      %vm310 = vcmask 261120
      %v312 = vsel %vm310, %v301, 0
      %314 = vmatpush.msra.mxu0 0.0
      %315 = vmatpush.msra.mxu0 0.0
      %316 = vmatpush.msra.mxu0 0.0
      %317 = vmatpush.msra.mxu0 0.0
      %318 = vmatpush.msra.mxu0 0.0
      %319 = vmatpush.msra.mxu0 0.0
      %320 = vmatpush.msra.mxu0 0.0
      %321 = vmatpush.msra.mxu0 0.0
      %322 = vmatpush.msra.mxu0 0.0
      %323 = vmatpush.msra.mxu0 0.0
      %324 = vmatpush.msra.mxu0 0.0
      %325 = vmatpush.msra.mxu0 0.0
      %326 = vmatpush.msra.mxu0 %v305
      %327 = vmatpush.msra.mxu0 %v304
      %328 = vmatpush.msra.mxu0 %v303
      %329 = vmatpush.msra.mxu0 %v302
      %330 = vmatmul.f32.gmra.mxu0 %v312
      %v331 = vpop.f32.mrf.mxu0
      %v332 = vadd.f32 %v308, %v331
      %333 = vdwg.mxu0
      %v334 = vmax.f32 %v332, 0.0
      %v335 = vld [vmem:[%s3] sm:$0xf]
      %v336 = vld [vmem:[%s4] sm:$0x1]
      %v338 = vperm.slane %v336, 0
      %vm340 = vcmask 31744
      %v342 = vsel %vm340, %v334, 0
      %vm344 = vcmask 1043456
      %v346 = vsel %vm344, %v335, 0
      %348 = vmatpush.msra.mxu0 0.0
      %349 = vmatpush.msra.mxu0 0.0
      %350 = vmatpush.msra.mxu0 0.0
      %351 = vmatpush.msra.mxu0 0.0
      %352 = vmatpush.msra.mxu0 0.0
      %353 = vmatpush.msra.mxu0 0.0
      %354 = vmatpush.msra.mxu0 0.0
      %355 = vmatpush.msra.mxu0 0.0
      %356 = vmatpush.msra.mxu0 0.0
      %357 = vmatpush.msra.mxu0 0.0
      %358 = vmatpush.msra.mxu0 0.0
      %359 = vmatpush.msra.mxu0 0.0
      %360 = vmatpush.msra.mxu0 0.0
      %361 = vmatpush.msra.mxu0 0.0
      %362 = vmatpush.msra.mxu0 0.0
      %363 = vmatpush.msra.mxu0 %v346
      %364 = vmatmul.f32.gmra.mxu0 %v342
      %v365 = vpop.f32.mrf.mxu0
      %v366 = vadd.f32 %v338, %v365
      %367 = vdwg.mxu0
      %v368 = vxor.u32 %v366, 2147483648
      %v369 = vmul.f32 %v368, 1.442695
      %v370 = vpow.pop %v369
      %v371 = vadd.f32 %v370, 1.0
      %v372 = vrcp.pop %v371
      %v373 = vmul.f32 %v371, %v372
      %v374 = vsub.f32 1.0, %v373
      %v375 = vmul.f32 %v372, %v374
      %v376 = vadd.f32 %v372, %v375
      %vm377 = vweird.f32 %v371
      %vm378 = vweird.f32 %v372
      %vm379 = vmor %vm377, %vm378
      %v380 = vsel %vm379, %v372, %v376
      %v381 = vand.u32 2147483647, %v371
      %vm382 = vcmp.eq.f32.partialorder %v381, 8.507059e+37
      %v383 = vand.u32 %v371, 2147483648
      %v384 = vor.u32 1.1754944e-38, %v383
      %v385 = vsel %vm382, %v384, %v380
      %v386 = vmul.f32 1.0, %v385
      %v388 = vrot.slane %v386, 1
      %389 = vrot.lane.b32.xlu0 %v388, 96
      %v390 = vpop.permute.xlu0 %389
      %v392 = vsub.f32 %v386, %v390
      %v393 = vrot.slane %v386, 7
      %394 = vrot.lane.b32.xlu0 %v393, 96
      %v395 = vpop.permute.xlu0 %394
      %v397 = vadd.f32 %v386, %v395
      %v398 = vperm.slane %v392, 0
      %v399 = vlaneseq
      %v400 = vshrl.u32 %v399, 7
      %402 = vset.pattern.permute.xlu0 %v400
      %403 = vperm.xlu0 %402, %v398
      %v404 = vpop.permute.xlu0 %403
      %v405 = vlaneseq
      %v406 = vshrl.u32 %v405, 7
      %v407 = vadd.s32 %v406, 8
      %408 = vset.pattern.permute.xlu0 %v407
      %409 = vperm.xlu0 %408, %v398
      %v410 = vpop.permute.xlu0 %409
      %v411 = vlaneseq
      %v412 = vshrl.u32 %v411, 7
      %v413 = vadd.s32 %v412, 16
      %414 = vset.pattern.permute.xlu0 %v413
      %415 = vperm.xlu0 %414, %v398
      %v416 = vpop.permute.xlu0 %415
      %v417 = vlaneseq
      %v418 = vshrl.u32 %v417, 7
      %v419 = vadd.s32 %v418, 24
      %420 = vset.pattern.permute.xlu0 %v419
      %421 = vperm.xlu0 %420, %v398
      %v422 = vpop.permute.xlu0 %421
      %v423 = vperm.slane %v397, 1
      %v424 = vlaneseq
      %v425 = vshrl.u32 %v424, 7
      %427 = vset.pattern.permute.xlu0 %v425
      %428 = vperm.xlu0 %427, %v423
      %v429 = vpop.permute.xlu0 %428
      %v430 = vlaneseq
      %v431 = vshrl.u32 %v430, 7
      %v432 = vadd.s32 %v431, 8
      %433 = vset.pattern.permute.xlu0 %v432
      %434 = vperm.xlu0 %433, %v423
      %v435 = vpop.permute.xlu0 %434
      %v436 = vlaneseq
      %v437 = vshrl.u32 %v436, 7
      %v438 = vadd.s32 %v437, 16
      %439 = vset.pattern.permute.xlu0 %v438
      %440 = vperm.xlu0 %439, %v423
      %v441 = vpop.permute.xlu0 %440
      %v442 = vlaneseq
      %v443 = vshrl.u32 %v442, 7
      %v444 = vadd.s32 %v443, 24
      %445 = vset.pattern.permute.xlu0 %v444
      %446 = vperm.xlu0 %445, %v423
      %v447 = vpop.permute.xlu0 %446
      %v448 = vsel %vm253, %v404, %v429
      %v449 = vsel %vm253, %v410, %v435
      %v450 = vsel %vm253, %v416, %v441
      %v451 = vsel %vm253, %v422, %v447
      %v452 = vmul.f32 %v225, %v448
      %v453 = vmul.f32 %v226, %v449
      %v454 = vmul.f32 %v227, %v450
      %v455 = vmul.f32 %v228, %v451
      %456 = vst [vmem:[%s224] sm:$0xff] %v452
      %457 = vst [vmem:[%s224 + $0x8] sm:$0xff] %v453
      %458 = vst [vmem:[%s224 + $0x10] sm:$0xff] %v454
      %459 = vst [vmem:[%s224 + $0x18] sm:$0xff] %v455
      %p460 = scmp.lt.s32.totalorder %s16, 1
      %s461 = scalar_select %p460, %s16, 1
      %s462 = smul.addr %s461, 4
      %s463 = smul.addr %s462, 8
      %s464 = scalar_lea.vmem %s5, %s463
      // Predicated region
      $region41: #{_se_layer_impl.1} parent=39 // pred_check
        %p465 = pneg %p144
      $region42: #{_se_layer_impl.1} parent=39 // pred_check_branch
        %467 = sbr.rel (%p465) target = $region44
      $region43: #{_se_layer_impl.1} parent=39 // pred_region
        _
      $region44: #{_se_layer_impl.1} parent=39 // pred_fallthru
        _
    $region40: #{_se_layer_impl.1} parent=5 // pred_fallthru
      _
    %p468 = scmp.le.s32.totalorder 2, %s11
    // Predicated region
    $region45: #{_se_layer_impl.1} parent=5 // pred_check
      %p469 = pneg %p468
    $region46: #{_se_layer_impl.1} parent=5 // pred_check_branch
      %471 = sbr.rel (%p469) target = $region48
    $region47: #{_se_layer_impl.1} parent=5 // pred_region
      %s472 = ssub.s32 %s11, 2
      // Predicated region
      $region49: #{_se_layer_impl.1} parent=47 // pred_check
        %p473 = pneg %p150
      $region50: #{_se_layer_impl.1} parent=47 // pred_check_branch
        %475 = sbr.rel (%p473) target = $region52
      $region51: #{_se_layer_impl.1} parent=47 // pred_region
        %p476 = scmp.lt.s32.totalorder %s17, 1
        %s477 = scalar_select %p476, %s17, 1
        %s478 = smul.addr %s477, 4
        %s479 = smul.addr %s478, 8
        %s480 = scalar_lea.vmem %s5, %s479
      $region52: #{_se_layer_impl.1} parent=47 // pred_fallthru
        _
    $region48: #{_se_layer_impl.1} parent=5 // pred_fallthru
      _
  $region6: #{_se_layer_impl.1} parent=0 // loop_footer
    %s15 = sadd.s32 1, %s11
  $region7: #{_se_layer_impl.1} parent=0 // loop_footer_branch
    %10 = sbr.rel target = $region3
  $region8: #{_se_layer_impl.1} parent=0 // loop_exit
    _

</llo_original>
